<compile_context>
chip_gen: v6e
topology: v6e:2x2x1
jax: 0.10.0
libtpu: 0.0.40
codegen_flags: <defaults>
</compile_context>

<pallas_src>
import functools
import math

import jax
import jax.numpy as jnp
from jax.experimental import pallas as pl
from jax.experimental.pallas import tpu as pltpu


def _round_up(x, m):
    return (x + m - 1) // m * m


def _cdiv(a, b):
    return (a + b - 1) // b


def _conv1d_kernel(x_ref, w_ref, b_ref, o_ref, *scratch, k_size, dilation,
                   stride, tt):
    """One output row tile: fused-tap MXU contraction.

    x_ref: (1, win, C_in_pad) bf16   -- input window for this tile
    w_ref: (K*C_in_pad, C_out_pad) bf16 -- taps stacked along contraction dim
    b_ref: (1, C_out_pad) f32
    o_ref: (1, tt, C_out_pad) f32
    scratch[0]: (tt, K*C_in_pad) bf16 fused LHS (absent when K==1, stride==1)
    """
    if k_size == 1 and stride == 1:
        lhs = x_ref[0]                       # window == tile, no assembly
    else:
        lhs_ref = scratch[0]
        c_in_pad = x_ref.shape[-1]
        for k in range(k_size):              # K is small & static: unrolled
            if stride == 1:
                win_k = x_ref[0, pl.ds(k * dilation, tt), :]
            else:
                win_k = x_ref[0, pl.ds(k * dilation, tt, stride=stride), :]
            lhs_ref[:, k * c_in_pad:(k + 1) * c_in_pad] = win_k
        lhs = lhs_ref[...]
    acc = jnp.dot(lhs, w_ref[...], preferred_element_type=jnp.float32)
    o_ref[...] = (acc + b_ref[...])[None].astype(o_ref.dtype)


def convnorm_forward(x, w, b, *, stride=1, padding=None, dilation=1, tt=256):
    """Conv1d forward matching torch.nn.Conv1d semantics.

    x: (B, C_in, T) float32
    w: (C_out, C_in, K) float32  (torch Conv1d weight layout)
    b: (C_out,) float32
    returns: (B, C_out, T_out) float32
    """
    B, c_in, T = x.shape
    c_out, c_in_w, k_size = w.shape
    assert c_in_w == c_in
    if padding is None:
        assert k_size % 2 == 1
        padding = dilation * (k_size - 1) // 2

    halo = dilation * (k_size - 1)
    t_out = (T + 2 * padding - halo - 1) // stride + 1
    assert t_out > 0

    c_in_pad = _round_up(c_in, 128)
    c_out_pad = _round_up(c_out, 128)

    # Per-batch row pitches.  P_in = P_out*stride >= T + 2*padding guarantees
    # the windows of all *valid* output rows stay inside their own batch
    # element's rows; rows [t_out, P_out) per batch are garbage, sliced off.
    p_out = max(t_out, _cdiv(T + 2 * padding, stride))
    p_in = p_out * stride

    total_out = B * p_out
    tt_eff = min(tt, _round_up(total_out, 8))      # sweep 256/512 on v5e/v6e
    total_out_pad = _round_up(total_out, tt_eff)
    n_tiles = total_out_pad // tt_eff
    win = (tt_eff - 1) * stride + halo + 1         # input rows per tile window
    total_in = (total_out_pad - 1) * stride + halo + 1

    # (B, C_in, T) -> flat (rows, C_in_pad) bf16, each batch element laid out
    # as [pad_left | signal | pad_right] inside its P_in-row band.
    x_t = jnp.transpose(x, (0, 2, 1)).astype(jnp.bfloat16)
    x_t = jnp.pad(x_t, ((0, 0), (padding, p_in - padding - T),
                        (0, c_in_pad - c_in)))
    x_flat = x_t.reshape(B * p_in, c_in_pad)
    if total_in > B * p_in:
        x_flat = jnp.pad(x_flat, ((0, total_in - B * p_in), (0, 0)))

    # Per-tile input windows (halo rows duplicated between neighbouring tiles)
    # so each grid step DMAs only its own bounded window -- VMEM use no longer
    # scales with T.
    if n_tiles == 1:
        x_chunks = x_flat[:win][None]
    elif stride == 1 and halo == 0:
        x_chunks = x_flat[:n_tiles * tt_eff].reshape(n_tiles, tt_eff, c_in_pad)
    else:
        row_idx = (jnp.arange(n_tiles, dtype=jnp.int32)[:, None]
                   * (tt_eff * stride)
                   + jnp.arange(win, dtype=jnp.int32)[None, :])
        x_chunks = jnp.take(x_flat, row_idx, axis=0)

    # (C_out, C_in, K) -> (K*C_in_pad, C_out_pad) bf16: taps stacked along the
    # contraction dim for a single fused MXU matmul per tile.
    w_t = jnp.transpose(w, (2, 1, 0))
    w_t = jnp.pad(w_t, ((0, 0), (0, c_in_pad - c_in), (0, c_out_pad - c_out)))
    w_t = w_t.reshape(k_size * c_in_pad, c_out_pad).astype(jnp.bfloat16)
    b_t = jnp.pad(b, (0, c_out_pad - c_out)).reshape(1, c_out_pad)

    fuse_lhs = not (k_size == 1 and stride == 1)
    scratch_shapes = (
        [pltpu.VMEM((tt_eff, k_size * c_in_pad), jnp.bfloat16)]
        if fuse_lhs else [])

    kernel = functools.partial(_conv1d_kernel, k_size=k_size,
                               dilation=dilation, stride=stride, tt=tt_eff)
    # NOTE: weight/bias index maps are constant across the grid, so their
    # blocks are not re-fetched per step.
    # TODO(synk): single-buffer weight/bias (pipeline_mode=pl.Buffered(1)) and
    # optional bf16 output once validated on all target chips.
    out = pl.pallas_call(
        kernel,
        out_shape=jax.ShapeDtypeStruct((n_tiles, tt_eff, c_out_pad),
                                       jnp.float32),
        grid=(n_tiles,),
        in_specs=[
            pl.BlockSpec((1, win, c_in_pad), lambda i: (i, 0, 0)),
            pl.BlockSpec((k_size * c_in_pad, c_out_pad), lambda i: (0, 0)),
            pl.BlockSpec((1, c_out_pad), lambda i: (0, 0)),
        ],
        out_specs=pl.BlockSpec((1, tt_eff, c_out_pad), lambda i: (i, 0, 0)),
        scratch_shapes=scratch_shapes,
        # Per-step VMEM is a few MiB (bounded window + fused weights), well
        # under the default scoped limit on every chip -- do NOT request the
        # whole 64 MiB of a v7x TensorCore.
        compiler_params=pltpu.CompilerParams(
            dimension_semantics=("parallel",),
        ),
    )(x_chunks, w_t, b_t)

    y = out.reshape(total_out_pad, c_out_pad)[:total_out]
    y = y.reshape(B, p_out, c_out_pad)[:, :t_out, :c_out]
    return jnp.transpose(y, (0, 2, 1))


def init_params(key, c_in, c_out, k_size):
    """Mimics ConvNorm: xavier_uniform_(gain='linear') weight + default bias."""
    kw, kb = jax.random.split(key)
    fan_in = c_in * k_size
    fan_out = c_out * k_size
    wb = math.sqrt(6.0 / (fan_in + fan_out))
    w = jax.random.uniform(kw, (c_out, c_in, k_size), jnp.float32, -wb, wb)
    bb = 1.0 / math.sqrt(fan_in)
    b = jax.random.uniform(kb, (c_out,), jnp.float32, -bb, bb)
    return w, b


def convnorm_ref(x, w, b, *, stride=1, padding=None, dilation=1):
    """Pure-JAX (f32) reference for correctness checking."""
    _, _, k_size = w.shape
    if padding is None:
        padding = dilation * (k_size - 1) // 2
    y = jax.lax.conv_general_dilated(
        x, w,
        window_strides=(stride,),
        padding=[(padding, padding)],
        rhs_dilation=(dilation,),
        dimension_numbers=("NCH", "OIH", "NCH"),
    )
    return y + b[None, :, None]


def _check(y, y_ref):
    # bf16 MXU operands with f32 accumulation -> bf16-aware tolerance.
    assert jnp.allclose(y, y_ref, atol=3e-2, rtol=3e-2), float(
        jnp.max(jnp.abs(y - y_ref)))


if __name__ == "__main__":
    key = jax.random.PRNGKey(0)
    kx, kx2, kp1, kp2, kp3 = jax.random.split(key, 5)

    B, C_IN, T = 2, 80, 16  # small audio-ish shapes: 80 mel bins, seq=16
    x = jax.random.normal(kx, (B, C_IN, T), jnp.float32)

    # Case 1: ConvNorm(80, 128, kernel_size=5) -> 'same' padding of 2.
    C_OUT, K = 128, 5
    w, b = init_params(kp1, C_IN, C_OUT, K)
    y = convnorm_forward(x, w, b)
    jax.block_until_ready(y)
    assert y.shape == (B, C_OUT, T)
    _check(y, convnorm_ref(x, w, b))

    # Case 2: ConvNorm(80, 128) with default kernel_size=1 (pointwise conv).
    w1, b1 = init_params(kp2, C_IN, C_OUT, 1)
    y1 = convnorm_forward(x, w1, b1)
    jax.block_until_ready(y1)
    assert y1.shape == (B, C_OUT, T)
    _check(y1, convnorm_ref(x, w1, b1))

    # Case 3: dilation=2 kernel_size=3 + longer sequence (multi-tile, gathered
    # halo windows path).
    T3 = 200
    x3 = jax.random.normal(kx2, (B, C_IN, T3), jnp.float32)
    w3, b3 = init_params(kp3, C_IN, C_OUT, 3)
    y3 = convnorm_forward(x3, w3, b3, dilation=2)
    jax.block_until_ready(y3)
    assert y3.shape == (B, C_OUT, T3)
    _check(y3, convnorm_ref(x3, w3, b3, dilation=2))

    print("KERNEL_OK")
</pallas_src>

<mosaic_0001>
module attributes {stable_mosaic.version = 11 : i64} {
  func.func @_conv1d_kernel(%arg0: i32, %arg1: memref<1x44x128xbf16, #tpu.memory_space<vmem>>, %arg2: memref<640x128xbf16, #tpu.memory_space<vmem>>, %arg3: memref<1x128xf32, #tpu.memory_space<vmem>>, %arg4: memref<1x40x128xf32, #tpu.memory_space<vmem>>, %arg5: memref<40x640xbf16, #tpu.memory_space<vmem>>) attributes {dimension_semantics = [#tpu.dimension_semantics<parallel>], iteration_bounds = array<i64: 1>, scalar_prefetch = 0 : i64, scratch_operands = 1 : i64, tpu.core_type = #tpu.core_type<tc>, window_params = [{transform_indices = @transform_0, window_bounds = array<i64: 1, 44, 128>}, {pipeline_mode = #tpu.pipeline_mode<synchronous>, transform_indices = @transform_1, window_bounds = array<i64: 640, 128>}, {pipeline_mode = #tpu.pipeline_mode<synchronous>, transform_indices = @transform_2, window_bounds = array<i64: 1, 128>}, {transform_indices = @transform_3, window_bounds = array<i64: 1, 40, 128>}]} {
    %c0 = arith.constant 0 : index
    %c0_0 = arith.constant 0 : index
    %c0_1 = arith.constant 0 : index
    %0 = vector.load %arg1[%c0, %c0_0, %c0_1] : memref<1x44x128xbf16, #tpu.memory_space<vmem>>, vector<1x40x128xbf16>
    %1 = vector.shape_cast %0 : vector<1x40x128xbf16> to vector<40x128xbf16>
    %c0_2 = arith.constant 0 : index
    %c0_3 = arith.constant 0 : index
    %2 = vector.load %arg5[%c0_2, %c0_3] : memref<40x640xbf16, #tpu.memory_space<vmem>>, vector<40x128xbf16>
    tpu.vector_store %arg5[%c0_2, %c0_3], %1 {strides = array<i32>} : memref<40x640xbf16, #tpu.memory_space<vmem>>, vector<40x128xbf16>,
    %c0_4 = arith.constant 0 : index
    %c1 = arith.constant 1 : index
    %c0_5 = arith.constant 0 : index
    %3 = vector.load %arg1[%c0_4, %c1, %c0_5] : memref<1x44x128xbf16, #tpu.memory_space<vmem>>, vector<1x40x128xbf16>
    %4 = vector.shape_cast %3 : vector<1x40x128xbf16> to vector<40x128xbf16>
    %c0_6 = arith.constant 0 : index
    %c128 = arith.constant 128 : index
    %5 = vector.load %arg5[%c0_6, %c128] : memref<40x640xbf16, #tpu.memory_space<vmem>>, vector<40x128xbf16>
    tpu.vector_store %arg5[%c0_6, %c128], %4 {strides = array<i32>} : memref<40x640xbf16, #tpu.memory_space<vmem>>, vector<40x128xbf16>,
    %c0_7 = arith.constant 0 : index
    %c2 = arith.constant 2 : index
    %c0_8 = arith.constant 0 : index
    %6 = vector.load %arg1[%c0_7, %c2, %c0_8] : memref<1x44x128xbf16, #tpu.memory_space<vmem>>, vector<1x40x128xbf16>
    %7 = vector.shape_cast %6 : vector<1x40x128xbf16> to vector<40x128xbf16>
    %c0_9 = arith.constant 0 : index
    %c256 = arith.constant 256 : index
    %8 = vector.load %arg5[%c0_9, %c256] : memref<40x640xbf16, #tpu.memory_space<vmem>>, vector<40x128xbf16>
    tpu.vector_store %arg5[%c0_9, %c256], %7 {strides = array<i32>} : memref<40x640xbf16, #tpu.memory_space<vmem>>, vector<40x128xbf16>,
    %c0_10 = arith.constant 0 : index
    %c3 = arith.constant 3 : index
    %c0_11 = arith.constant 0 : index
    %9 = vector.load %arg1[%c0_10, %c3, %c0_11] : memref<1x44x128xbf16, #tpu.memory_space<vmem>>, vector<1x40x128xbf16>
    %10 = vector.shape_cast %9 : vector<1x40x128xbf16> to vector<40x128xbf16>
    %c0_12 = arith.constant 0 : index
    %c384 = arith.constant 384 : index
    %11 = vector.load %arg5[%c0_12, %c384] : memref<40x640xbf16, #tpu.memory_space<vmem>>, vector<40x128xbf16>
    tpu.vector_store %arg5[%c0_12, %c384], %10 {strides = array<i32>} : memref<40x640xbf16, #tpu.memory_space<vmem>>, vector<40x128xbf16>,
    %c0_13 = arith.constant 0 : index
    %c4 = arith.constant 4 : index
    %c0_14 = arith.constant 0 : index
    %12 = vector.load %arg1[%c0_13, %c4, %c0_14] : memref<1x44x128xbf16, #tpu.memory_space<vmem>>, vector<1x40x128xbf16>
    %13 = vector.shape_cast %12 : vector<1x40x128xbf16> to vector<40x128xbf16>
    %c0_15 = arith.constant 0 : index
    %c512 = arith.constant 512 : index
    %14 = vector.load %arg5[%c0_15, %c512] : memref<40x640xbf16, #tpu.memory_space<vmem>>, vector<40x128xbf16>
    tpu.vector_store %arg5[%c0_15, %c512], %13 {strides = array<i32>} : memref<40x640xbf16, #tpu.memory_space<vmem>>, vector<40x128xbf16>,
    %c0_16 = arith.constant 0 : index
    %c0_17 = arith.constant 0 : index
    %15 = vector.load %arg5[%c0_16, %c0_17] : memref<40x640xbf16, #tpu.memory_space<vmem>>, vector<40x640xbf16>
    %c0_18 = arith.constant 0 : index
    %c0_19 = arith.constant 0 : index
    %16 = vector.load %arg2[%c0_18, %c0_19] : memref<640x128xbf16, #tpu.memory_space<vmem>>, vector<640x128xbf16>
    %cst = arith.constant dense<0.000000e+00> : vector<40x128xf32>
    %17 = tpu.matmul %15, %16, %cst {dimension_numbers = #tpu.dot_dimension_numbers<[1], [0], [0], [1], [0, 0, 1, 1], [], []>} : vector<40x640xbf16>, vector<640x128xbf16>, vector<40x128xf32> -> vector<40x128xf32>
    %c0_20 = arith.constant 0 : index
    %c0_21 = arith.constant 0 : index
    %18 = vector.load %arg3[%c0_20, %c0_21] : memref<1x128xf32, #tpu.memory_space<vmem>>, vector<1x128xf32>
    %19 = vector.broadcast %18 : vector<1x128xf32> to vector<40x128xf32>
    %20 = arith.addf %17, %19 : vector<40x128xf32>
    %21 = vector.shape_cast %20 : vector<40x128xf32> to vector<1x40x128xf32>
    %c0_22 = arith.constant 0 : index
    %c0_23 = arith.constant 0 : index
    %c0_24 = arith.constant 0 : index
    %22 = vector.load %arg4[%c0_22, %c0_23, %c0_24] : memref<1x40x128xf32, #tpu.memory_space<vmem>>, vector<1x40x128xf32>
    tpu.vector_store %arg4[%c0_22, %c0_23, %c0_24], %21 {strides = array<i32>} : memref<1x40x128xf32, #tpu.memory_space<vmem>>, vector<1x40x128xf32>,
    return
  }
  func.func @transform_0(%arg0: i32) -> (i32, i32, i32) {
    %c0_i32 = arith.constant 0 : i32
    %c0_i32_0 = arith.constant 0 : i32
    %c0_i32_1 = arith.constant 0 : i32
    return %arg0, %c0_i32, %c0_i32_0 : i32, i32, i32
  }
  func.func @transform_1(%arg0: i32) -> (i32, i32) {
    %c0_i32 = arith.constant 0 : i32
    %c0_i32_0 = arith.constant 0 : i32
    %c0_i32_1 = arith.constant 0 : i32
    return %c0_i32, %c0_i32_0 : i32, i32
  }
  func.func @transform_2(%arg0: i32) -> (i32, i32) {
    %c0_i32 = arith.constant 0 : i32
    %c0_i32_0 = arith.constant 0 : i32
    %c0_i32_1 = arith.constant 0 : i32
    return %c0_i32, %c0_i32_0 : i32, i32
  }
  func.func @transform_3(%arg0: i32) -> (i32, i32, i32) {
    %c0_i32 = arith.constant 0 : i32
    %c0_i32_0 = arith.constant 0 : i32
    %c0_i32_1 = arith.constant 0 : i32
    return %arg0, %c0_i32, %c0_i32_0 : i32, i32, i32
  }
}

</mosaic_0001>

<llo_original>
// kernel: tpu_custom_call.1
$region0: #{tpu_custom_call.1}
  #allocation0 [shape = 'u32[]', space=smem, size = 0x4, offset = 0x4, fixed_abs, tag = 'smem constant byte address 0x4 - core index']
  #allocation1 [shape = 'u32[144,128]{1,0:T(1,128)}', space=vmem, size = 0x12000, scoped, tag = 'internal scratch']
  #allocation2 [shape = 'bf16[40,640]{1,0:T(8,128)(2,1)}', space=vmem, size = 0xc800, scoped, tag = 'scratch operand']
  %s0 = inlined_call_operand.hbm [shape: bf16[1,44,128], index: 0, kind: input, shape index: {}]
  %s1 = inlined_call_operand.hbm [shape: bf16[640,128], index: 1, kind: input, shape index: {}]
  %s2 = inlined_call_operand.vmem [shape: f32[1,128], index: 2, kind: input, shape index: {}]
  %s3 = inlined_call_operand.hbm [shape: f32[1,40,128], index: 3, kind: output, shape index: {}]
  %s4 = sld [smem:[#allocation0]]
  $region30: #{tpu_custom_call.1} parent=0
    _
  %s6 = ssub.s32 1, %s4
  %s7 = scalar_select 0, %s6, %s4
  $region1: #{tpu_custom_call.1} parent=0
    #allocation3 [shape = 'u8[12288]{0}', space=vmem, size = 0x3000, scoped, tag = 'input window, operand 0, single buffered']
    #allocation4 [shape = 's32[1]{0}', space=sflag, size = 0x4, scoped, tag = 'scoped memory for tpu_custom_call.1']
    #allocation5 [shape = 's32[1]{0}', space=sflag, size = 0x4, scoped, tag = 'scoped memory for tpu_custom_call.1']
    #allocation6 [shape = 'u8[163840]{0}', space=vmem, size = 0x28000, scoped, tag = 'input window, operand 1, single buffered']
    #allocation7 [shape = 's32[1]{0}', space=sflag, size = 0x4, scoped, tag = 'scoped memory for tpu_custom_call.1']
    #allocation8 [shape = 'u8[20480]{0}', space=vmem, size = 0x5000, scoped, tag = 'output window, operand 0, single buffered']
    %8 = vsyncpa [#allocation4], 0
    %9 = vsyncpa [#allocation7], 0
    %10 = vsyncpa [#allocation5], 0
    // Predicated region
    $region2: #{tpu_custom_call.1} parent=1 // pred_check
      _
    $region3: #{tpu_custom_call.1} parent=1 // pred_check_branch
      %12 = sbr.rel (0) target = $region5
    $region4: #{tpu_custom_call.1} parent=1 // pred_region
      %s14 = ssub.s32 384, 384
      %15 = vsyncadd [#allocation4], %s14
      %s16 = sshll.u32 [#allocation3], 4
      %s17 = int_to_ptr.vmem [resolvable:$true] %s16
      %22 = dma.hbm_to_vmem [thread:$0]  %s0, 384, %s17, [#allocation4], 64, 64, 4
    $region5: #{tpu_custom_call.1} parent=1 // pred_fallthru
      _
    // Predicated region
    $region6: #{tpu_custom_call.1} parent=1 // pred_check
      _
    $region7: #{tpu_custom_call.1} parent=1 // pred_check_branch
      %24 = sbr.rel (0) target = $region9
    $region8: #{tpu_custom_call.1} parent=1 // pred_region
      %s26 = ssub.s32 5120, 5120
      %27 = vsyncadd [#allocation7], %s26
      %s28 = sshll.u32 [#allocation6], 4
      %s29 = int_to_ptr.vmem [resolvable:$true] %s28
      %34 = dma.hbm_to_vmem [thread:$0]  %s1, 5120, %s29, [#allocation7], 64, 64, 4
    $region9: #{tpu_custom_call.1} parent=1 // pred_fallthru
      _
    // Predicated region
    $region10: #{tpu_custom_call.1} parent=1 // pred_check
      _
    $region11: #{tpu_custom_call.1} parent=1 // pred_check_branch
      %36 = sbr.rel (0) target = $region13
    $region12: #{tpu_custom_call.1} parent=1 // pred_region
      _
    $region13: #{tpu_custom_call.1} parent=1 // pred_fallthru
      _
    // Predicated region
    $region14: #{tpu_custom_call.1} parent=1 // pred_check
      _
    $region15: #{tpu_custom_call.1} parent=1 // pred_check_branch
      %38 = sbr.rel (0) target = $region17
    $region16: #{tpu_custom_call.1} parent=1 // pred_region
      %39 = dma.done [#allocation4], 384
    $region17: #{tpu_custom_call.1} parent=1 // pred_fallthru
      _
    // Predicated region
    $region18: #{tpu_custom_call.1} parent=1 // pred_check
      _
    $region19: #{tpu_custom_call.1} parent=1 // pred_check_branch
      %41 = sbr.rel (0) target = $region21
    $region20: #{tpu_custom_call.1} parent=1 // pred_region
      %42 = dma.done [#allocation7], 5120
    $region21: #{tpu_custom_call.1} parent=1 // pred_fallthru
      _
    %v44 = vld [vmem:[#allocation3] sm:$0xf]
    %v45 = vld [vmem:[#allocation3 + $0x4] sm:$0xf]
    %v46 = vld [vmem:[#allocation3 + $0x8] sm:$0xf]
    %v47 = vld [vmem:[#allocation3 + $0xc] sm:$0xf]
    %v48 = vld [vmem:[#allocation3 + $0x10] sm:$0xf]
    %49 = vst [vmem:[#allocation2] sm:$0xf] %v44
    %50 = vst [vmem:[#allocation2 + $0x14] sm:$0xf] %v45
    %51 = vst [vmem:[#allocation2 + $0x28] sm:$0xf] %v46
    %52 = vst [vmem:[#allocation2 + $0x3c] sm:$0xf] %v47
    %53 = vst [vmem:[#allocation2 + $0x50] sm:$0xf] %v48
    %v54 = vld [vmem:[#allocation3] sm:$0xf]
    %v55 = vld [vmem:[#allocation3 + $0x4] sm:$0xf]
    %v56 = vld [vmem:[#allocation3 + $0x8] sm:$0xf]
    %v57 = vld [vmem:[#allocation3 + $0xc] sm:$0xf]
    %v58 = vld [vmem:[#allocation3 + $0x10] sm:$0xf]
    %v59 = vld [vmem:[#allocation3 + $0x14] sm:$0x1]
    %vm60 = vsmask.f32 3328
    %vm61 = vsmask.f32 7440
    %vm62 = vmor %vm60, %vm61
    %v64 = vshrl.u32 %v54, 16
    %v66 = vrot.slane %v64, 4
    %v67 = vshll.u32 %v54, 16
    %v69 = vrot.slane %v67, 5
    %v70 = vor.u32 %v66, %v69
    %v71 = vrot.slane %v70, 4
    %v73 = vshll.u32 %v55, 16
    %v75 = vrot.slane %v73, 5
    %v76 = vsel %vm62, %v71, %v75
    %v77 = vshrl.u32 %v55, 16
    %v79 = vrot.slane %v77, 4
    %v80 = vor.u32 %v79, %v75
    %v81 = vrot.slane %v80, 4
    %v83 = vshll.u32 %v56, 16
    %v85 = vrot.slane %v83, 5
    %v86 = vsel %vm62, %v81, %v85
    %v87 = vshrl.u32 %v56, 16
    %v89 = vrot.slane %v87, 4
    %v90 = vor.u32 %v89, %v85
    %v91 = vrot.slane %v90, 4
    %v93 = vshll.u32 %v57, 16
    %v95 = vrot.slane %v93, 5
    %v96 = vsel %vm62, %v91, %v95
    %v97 = vshrl.u32 %v57, 16
    %v99 = vrot.slane %v97, 4
    %v100 = vor.u32 %v99, %v95
    %v101 = vrot.slane %v100, 4
    %v103 = vshll.u32 %v58, 16
    %v105 = vrot.slane %v103, 5
    %v106 = vsel %vm62, %v101, %v105
    %v107 = vshrl.u32 %v58, 16
    %v109 = vrot.slane %v107, 4
    %v110 = vor.u32 %v109, %v105
    %v111 = vrot.slane %v110, 4
    %v113 = vshll.u32 %v59, 16
    %v115 = vrot.slane %v113, 5
    %v116 = vsel %vm62, %v111, %v115
    %122 = vst [vmem:[#allocation2 + $0x4] sm:$0xf] %v76
    %123 = vst [vmem:[#allocation2 + $0x18] sm:$0xf] %v86
    %124 = vst [vmem:[#allocation2 + $0x2c] sm:$0xf] %v96
    %125 = vst [vmem:[#allocation2 + $0x40] sm:$0xf] %v106
    %126 = vst [vmem:[#allocation2 + $0x54] sm:$0xf] %v116
    %v127 = vld [vmem:[#allocation3] sm:$0xe]
    %v128 = vld [vmem:[#allocation3 + $0x4] sm:$0xf]
    %v129 = vld [vmem:[#allocation3 + $0x8] sm:$0xf]
    %v130 = vld [vmem:[#allocation3 + $0xc] sm:$0xf]
    %v131 = vld [vmem:[#allocation3 + $0x10] sm:$0xf]
    %v132 = vld [vmem:[#allocation3 + $0x14] sm:$0x1]
    %vm139 = vcmask 1042432
    %vm140 = vcmask 1046532
    %vm141 = vmor %vm139, %vm140
    %v142 = vrot.slane %v127, 5
    %v143 = vrot.slane %v142, 4
    %v144 = vrot.slane %v128, 5
    %v145 = vsel %vm141, %v143, %v144
    %v146 = vrot.slane %v144, 4
    %v147 = vrot.slane %v129, 5
    %v148 = vsel %vm141, %v146, %v147
    %v149 = vrot.slane %v147, 4
    %v150 = vrot.slane %v130, 5
    %v151 = vsel %vm141, %v149, %v150
    %v152 = vrot.slane %v150, 4
    %v153 = vrot.slane %v131, 5
    %v154 = vsel %vm141, %v152, %v153
    %v155 = vrot.slane %v153, 4
    %v156 = vrot.slane %v132, 5
    %v157 = vsel %vm141, %v155, %v156
    %163 = vst [vmem:[#allocation2 + $0x8] sm:$0xf] %v145
    %164 = vst [vmem:[#allocation2 + $0x1c] sm:$0xf] %v148
    %165 = vst [vmem:[#allocation2 + $0x30] sm:$0xf] %v151
    %166 = vst [vmem:[#allocation2 + $0x44] sm:$0xf] %v154
    %167 = vst [vmem:[#allocation2 + $0x58] sm:$0xf] %v157
    %v168 = vld [vmem:[#allocation3] sm:$0xe]
    %v169 = vld [vmem:[#allocation3 + $0x4] sm:$0xf]
    %v170 = vld [vmem:[#allocation3 + $0x8] sm:$0xf]
    %v171 = vld [vmem:[#allocation3 + $0xc] sm:$0xf]
    %v172 = vld [vmem:[#allocation3 + $0x10] sm:$0xf]
    %v173 = vld [vmem:[#allocation3 + $0x14] sm:$0x3]
    %vm174 = vsmask.f32 2304
    %vm175 = vsmask.f32 6416
    %vm176 = vmor %vm174, %vm175
    %v178 = vshrl.u32 %v168, 16
    %v180 = vrot.slane %v178, 5
    %v181 = vshll.u32 %v168, 16
    %v183 = vrot.slane %v181, 6
    %v184 = vor.u32 %v180, %v183
    %v185 = vrot.slane %v184, 4
    %v187 = vshrl.u32 %v169, 16
    %v189 = vrot.slane %v187, 5
    %v190 = vshll.u32 %v169, 16
    %v192 = vrot.slane %v190, 6
    %v193 = vor.u32 %v189, %v192
    %v194 = vsel %vm176, %v185, %v193
    %v195 = vrot.slane %v193, 4
    %v197 = vshrl.u32 %v170, 16
    %v199 = vrot.slane %v197, 5
    %v200 = vshll.u32 %v170, 16
    %v202 = vrot.slane %v200, 6
    %v203 = vor.u32 %v199, %v202
    %v204 = vsel %vm176, %v195, %v203
    %v205 = vrot.slane %v203, 4
    %v207 = vshrl.u32 %v171, 16
    %v209 = vrot.slane %v207, 5
    %v210 = vshll.u32 %v171, 16
    %v212 = vrot.slane %v210, 6
    %v213 = vor.u32 %v209, %v212
    %v214 = vsel %vm176, %v205, %v213
    %v215 = vrot.slane %v213, 4
    %v217 = vshrl.u32 %v172, 16
    %v219 = vrot.slane %v217, 5
    %v220 = vshll.u32 %v172, 16
    %v222 = vrot.slane %v220, 6
    %v223 = vor.u32 %v219, %v222
    %v224 = vsel %vm176, %v215, %v223
    %v225 = vrot.slane %v223, 4
    %v227 = vshrl.u32 %v173, 16
    %v229 = vrot.slane %v227, 5
    %v230 = vshll.u32 %v173, 16
    %v232 = vrot.slane %v230, 6
    %v233 = vor.u32 %v229, %v232
    %v234 = vsel %vm176, %v225, %v233
    %240 = vst [vmem:[#allocation2 + $0xc] sm:$0xf] %v194
    %241 = vst [vmem:[#allocation2 + $0x20] sm:$0xf] %v204
    %242 = vst [vmem:[#allocation2 + $0x34] sm:$0xf] %v214
    %243 = vst [vmem:[#allocation2 + $0x48] sm:$0xf] %v224
    %244 = vst [vmem:[#allocation2 + $0x5c] sm:$0xf] %v234
    %v245 = vld [vmem:[#allocation3] sm:$0xc]
    %v246 = vld [vmem:[#allocation3 + $0x4] sm:$0xf]
    %v247 = vld [vmem:[#allocation3 + $0x8] sm:$0xf]
    %v248 = vld [vmem:[#allocation3 + $0xc] sm:$0xf]
    %v249 = vld [vmem:[#allocation3 + $0x10] sm:$0xf]
    %v250 = vld [vmem:[#allocation3 + $0x14] sm:$0x3]
    %vm257 = vcmask 1041408
    %vm258 = vcmask 1045508
    %vm259 = vmor %vm257, %vm258
    %v260 = vrot.slane %v245, 6
    %v261 = vrot.slane %v260, 4
    %v262 = vrot.slane %v246, 6
    %v263 = vsel %vm259, %v261, %v262
    %v264 = vrot.slane %v262, 4
    %v265 = vrot.slane %v247, 6
    %v266 = vsel %vm259, %v264, %v265
    %v267 = vrot.slane %v265, 4
    %v268 = vrot.slane %v248, 6
    %v269 = vsel %vm259, %v267, %v268
    %v270 = vrot.slane %v268, 4
    %v271 = vrot.slane %v249, 6
    %v272 = vsel %vm259, %v270, %v271
    %v273 = vrot.slane %v271, 4
    %v274 = vrot.slane %v250, 6
    %v275 = vsel %vm259, %v273, %v274
    %281 = vst [vmem:[#allocation2 + $0x10] sm:$0xf] %v263
    %282 = vst [vmem:[#allocation2 + $0x24] sm:$0xf] %v266
    %283 = vst [vmem:[#allocation2 + $0x38] sm:$0xf] %v269
    %284 = vst [vmem:[#allocation2 + $0x4c] sm:$0xf] %v272
    %285 = vst [vmem:[#allocation2 + $0x60] sm:$0xf] %v275
    %v286 = vld [vmem:[#allocation2] sm:$0xff]
    %v287 = vld [vmem:[#allocation2 + $0x8] sm:$0xff]
    %v288 = vld [vmem:[#allocation2 + $0x10] sm:$0xf]
    %v289 = vld [vmem:[#allocation2 + $0x14] sm:$0xff]
    %v290 = vld [vmem:[#allocation2 + $0x1c] sm:$0xff]
    %v291 = vld [vmem:[#allocation2 + $0x24] sm:$0xf]
    %v292 = vld [vmem:[#allocation2 + $0x28] sm:$0xff]
    %v293 = vld [vmem:[#allocation2 + $0x30] sm:$0xff]
    %v294 = vld [vmem:[#allocation2 + $0x38] sm:$0xf]
    %v295 = vld [vmem:[#allocation2 + $0x3c] sm:$0xff]
    %v296 = vld [vmem:[#allocation2 + $0x44] sm:$0xff]
    %v297 = vld [vmem:[#allocation2 + $0x4c] sm:$0xf]
    %v298 = vld [vmem:[#allocation2 + $0x50] sm:$0xff]
    %v299 = vld [vmem:[#allocation2 + $0x58] sm:$0xff]
    %v300 = vld [vmem:[#allocation2 + $0x60] sm:$0xf]
    %v301 = vld [vmem:[#allocation6] sm:$0xf]
    %v302 = vld [vmem:[#allocation6 + $0x4] sm:$0xf]
    %v303 = vld [vmem:[#allocation6 + $0x8] sm:$0xf]
    %v304 = vld [vmem:[#allocation6 + $0xc] sm:$0xf]
    %v305 = vld [vmem:[#allocation6 + $0x10] sm:$0xf]
    %v306 = vld [vmem:[#allocation6 + $0x14] sm:$0xf]
    %v307 = vld [vmem:[#allocation6 + $0x18] sm:$0xf]
    %v308 = vld [vmem:[#allocation6 + $0x1c] sm:$0xf]
    %v309 = vld [vmem:[#allocation6 + $0x20] sm:$0xf]
    %v310 = vld [vmem:[#allocation6 + $0x24] sm:$0xf]
    %v311 = vld [vmem:[#allocation6 + $0x28] sm:$0xf]
    %v312 = vld [vmem:[#allocation6 + $0x2c] sm:$0xf]
    %v313 = vld [vmem:[#allocation6 + $0x30] sm:$0xf]
    %v314 = vld [vmem:[#allocation6 + $0x34] sm:$0xf]
    %v315 = vld [vmem:[#allocation6 + $0x38] sm:$0xf]
    %v316 = vld [vmem:[#allocation6 + $0x3c] sm:$0xf]
    %v317 = vld [vmem:[#allocation6 + $0x40] sm:$0xf]
    %v318 = vld [vmem:[#allocation6 + $0x44] sm:$0xf]
    %v319 = vld [vmem:[#allocation6 + $0x48] sm:$0xf]
    %v320 = vld [vmem:[#allocation6 + $0x4c] sm:$0xf]
    %v321 = vld [vmem:[#allocation6 + $0x50] sm:$0xf]
    %v322 = vld [vmem:[#allocation6 + $0x54] sm:$0xf]
    %v323 = vld [vmem:[#allocation6 + $0x58] sm:$0xf]
    %v324 = vld [vmem:[#allocation6 + $0x5c] sm:$0xf]
    %v325 = vld [vmem:[#allocation6 + $0x60] sm:$0xf]
    %v326 = vld [vmem:[#allocation6 + $0x64] sm:$0xf]
    %v327 = vld [vmem:[#allocation6 + $0x68] sm:$0xf]
    %v328 = vld [vmem:[#allocation6 + $0x6c] sm:$0xf]
    %v329 = vld [vmem:[#allocation6 + $0x70] sm:$0xf]
    %v330 = vld [vmem:[#allocation6 + $0x74] sm:$0xf]
    %v331 = vld [vmem:[#allocation6 + $0x78] sm:$0xf]
    %v332 = vld [vmem:[#allocation6 + $0x7c] sm:$0xf]
    %v333 = vld [vmem:[#allocation6 + $0x80] sm:$0xf]
    %v334 = vld [vmem:[#allocation6 + $0x84] sm:$0xf]
    %v335 = vld [vmem:[#allocation6 + $0x88] sm:$0xf]
    %v336 = vld [vmem:[#allocation6 + $0x8c] sm:$0xf]
    %v337 = vld [vmem:[#allocation6 + $0x90] sm:$0xf]
    %v338 = vld [vmem:[#allocation6 + $0x94] sm:$0xf]
    %v339 = vld [vmem:[#allocation6 + $0x98] sm:$0xf]
    %v340 = vld [vmem:[#allocation6 + $0x9c] sm:$0xf]
    %v341 = vld [vmem:[#allocation6 + $0xa0] sm:$0xf]
    %v342 = vld [vmem:[#allocation6 + $0xa4] sm:$0xf]
    %v343 = vld [vmem:[#allocation6 + $0xa8] sm:$0xf]
    %v344 = vld [vmem:[#allocation6 + $0xac] sm:$0xf]
    %v345 = vld [vmem:[#allocation6 + $0xb0] sm:$0xf]
    %v346 = vld [vmem:[#allocation6 + $0xb4] sm:$0xf]
    %v347 = vld [vmem:[#allocation6 + $0xb8] sm:$0xf]
    %v348 = vld [vmem:[#allocation6 + $0xbc] sm:$0xf]
    %v349 = vld [vmem:[#allocation6 + $0xc0] sm:$0xf]
    %v350 = vld [vmem:[#allocation6 + $0xc4] sm:$0xf]
    %v351 = vld [vmem:[#allocation6 + $0xc8] sm:$0xf]
    %v352 = vld [vmem:[#allocation6 + $0xcc] sm:$0xf]
    %v353 = vld [vmem:[#allocation6 + $0xd0] sm:$0xf]
    %v354 = vld [vmem:[#allocation6 + $0xd4] sm:$0xf]
    %v355 = vld [vmem:[#allocation6 + $0xd8] sm:$0xf]
    %v356 = vld [vmem:[#allocation6 + $0xdc] sm:$0xf]
    %v357 = vld [vmem:[#allocation6 + $0xe0] sm:$0xf]
    %v358 = vld [vmem:[#allocation6 + $0xe4] sm:$0xf]
    %v359 = vld [vmem:[#allocation6 + $0xe8] sm:$0xf]
    %v360 = vld [vmem:[#allocation6 + $0xec] sm:$0xf]
    %v361 = vld [vmem:[#allocation6 + $0xf0] sm:$0xf]
    %v362 = vld [vmem:[#allocation6 + $0xf4] sm:$0xf]
    %v363 = vld [vmem:[#allocation6 + $0xf8] sm:$0xf]
    %v364 = vld [vmem:[#allocation6 + $0xfc] sm:$0xf]
    %v365 = vld [vmem:[#allocation6 + $0x100] sm:$0xf]
    %v366 = vld [vmem:[#allocation6 + $0x104] sm:$0xf]
    %v367 = vld [vmem:[#allocation6 + $0x108] sm:$0xf]
    %v368 = vld [vmem:[#allocation6 + $0x10c] sm:$0xf]
    %v369 = vld [vmem:[#allocation6 + $0x110] sm:$0xf]
    %v370 = vld [vmem:[#allocation6 + $0x114] sm:$0xf]
    %v371 = vld [vmem:[#allocation6 + $0x118] sm:$0xf]
    %v372 = vld [vmem:[#allocation6 + $0x11c] sm:$0xf]
    %v373 = vld [vmem:[#allocation6 + $0x120] sm:$0xf]
    %v374 = vld [vmem:[#allocation6 + $0x124] sm:$0xf]
    %v375 = vld [vmem:[#allocation6 + $0x128] sm:$0xf]
    %v376 = vld [vmem:[#allocation6 + $0x12c] sm:$0xf]
    %v377 = vld [vmem:[#allocation6 + $0x130] sm:$0xf]
    %v378 = vld [vmem:[#allocation6 + $0x134] sm:$0xf]
    %v379 = vld [vmem:[#allocation6 + $0x138] sm:$0xf]
    %v380 = vld [vmem:[#allocation6 + $0x13c] sm:$0xf]
    %v381 = vld [vmem:[%s2] sm:$0x1]
    %v383 = vlaneseq
    %v384 = vshrl.u32 %v383, 7
    %v385 = vsub.s32 0, %v384
    %v386 = vrot.slane %v381, %v385
    %v403 = vunpack.c.l.b16 %v286
    %v404 = vunpack.c.h.b16 %v286
    %v405 = vunpack.c.l.b16 %v287
    %v406 = vunpack.c.h.b16 %v287
    %v407 = vunpack.c.l.b16 %v288
    %v408 = vunpack.c.l.b16 %v289
    %v409 = vunpack.c.h.b16 %v289
    %v410 = vunpack.c.l.b16 %v290
    %v411 = vunpack.c.h.b16 %v290
    %v412 = vunpack.c.l.b16 %v291
    %v413 = vunpack.c.l.b16 %v292
    %v414 = vunpack.c.h.b16 %v292
    %v415 = vunpack.c.l.b16 %v293
    %v416 = vunpack.c.h.b16 %v293
    %v417 = vunpack.c.l.b16 %v294
    %v418 = vunpack.c.l.b16 %v295
    %v419 = vunpack.c.h.b16 %v295
    %v420 = vunpack.c.l.b16 %v296
    %v421 = vunpack.c.h.b16 %v296
    %v422 = vunpack.c.l.b16 %v297
    %v423 = vunpack.c.l.b16 %v298
    %v424 = vunpack.c.h.b16 %v298
    %v425 = vunpack.c.l.b16 %v299
    %v426 = vunpack.c.h.b16 %v299
    %v427 = vunpack.c.l.b16 %v300
    %v428 = vpack.c.b16 %v408, %v403
    %v429 = vpack.c.b16 %v409, %v404
    %v430 = vpack.c.b16 %v410, %v405
    %v431 = vpack.c.b16 %v411, %v406
    %v432 = vpack.c.b16 %v412, %v407
    %v433 = vpack.c.b16 %v418, %v413
    %v434 = vpack.c.b16 %v419, %v414
    %v435 = vpack.c.b16 %v420, %v415
    %v436 = vpack.c.b16 %v421, %v416
    %v437 = vpack.c.b16 %v422, %v417
    %v438 = vpack.c.b16 %v423, %v423
    %v439 = vpack.c.b16 %v424, %v424
    %v440 = vpack.c.b16 %v425, %v425
    %v441 = vpack.c.b16 %v426, %v426
    %v442 = vpack.c.b16 %v427, %v427
    %v538 = vunpack.c.l.b16 %v301
    %v539 = vunpack.c.l.b16 %v302
    %v540 = vunpack.c.l.b16 %v303
    %v541 = vunpack.c.l.b16 %v304
    %v542 = vunpack.c.l.b16 %v305
    %v543 = vunpack.c.l.b16 %v306
    %v544 = vunpack.c.l.b16 %v307
    %v545 = vunpack.c.l.b16 %v308
    %v546 = vunpack.c.l.b16 %v309
    %v547 = vunpack.c.l.b16 %v310
    %v548 = vunpack.c.l.b16 %v311
    %v549 = vunpack.c.l.b16 %v312
    %v550 = vunpack.c.l.b16 %v313
    %v551 = vunpack.c.l.b16 %v314
    %v552 = vunpack.c.l.b16 %v315
    %v553 = vunpack.c.l.b16 %v316
    %v554 = vunpack.c.l.b16 %v317
    %v555 = vunpack.c.l.b16 %v318
    %v556 = vunpack.c.l.b16 %v319
    %v557 = vunpack.c.l.b16 %v320
    %v558 = vunpack.c.l.b16 %v321
    %v559 = vunpack.c.l.b16 %v322
    %v560 = vunpack.c.l.b16 %v323
    %v561 = vunpack.c.l.b16 %v324
    %v562 = vunpack.c.l.b16 %v325
    %v563 = vunpack.c.l.b16 %v326
    %v564 = vunpack.c.l.b16 %v327
    %v565 = vunpack.c.l.b16 %v328
    %v566 = vunpack.c.l.b16 %v329
    %v567 = vunpack.c.l.b16 %v330
    %v568 = vunpack.c.l.b16 %v331
    %v569 = vunpack.c.l.b16 %v332
    %v570 = vunpack.c.l.b16 %v333
    %v571 = vunpack.c.l.b16 %v334
    %v572 = vunpack.c.l.b16 %v335
    %v573 = vunpack.c.l.b16 %v336
    %v574 = vunpack.c.l.b16 %v337
    %v575 = vunpack.c.l.b16 %v338
    %v576 = vunpack.c.l.b16 %v339
    %v577 = vunpack.c.l.b16 %v340
    %v578 = vunpack.c.l.b16 %v341
    %v579 = vunpack.c.l.b16 %v342
    %v580 = vunpack.c.l.b16 %v343
    %v581 = vunpack.c.l.b16 %v344
    %v582 = vunpack.c.l.b16 %v345
    %v583 = vunpack.c.l.b16 %v346
    %v584 = vunpack.c.l.b16 %v347
    %v585 = vunpack.c.l.b16 %v348
    %v586 = vunpack.c.l.b16 %v349
    %v587 = vunpack.c.l.b16 %v350
    %v588 = vunpack.c.l.b16 %v351
    %v589 = vunpack.c.l.b16 %v352
    %v590 = vunpack.c.l.b16 %v353
    %v591 = vunpack.c.l.b16 %v354
    %v592 = vunpack.c.l.b16 %v355
    %v593 = vunpack.c.l.b16 %v356
    %v594 = vunpack.c.l.b16 %v357
    %v595 = vunpack.c.l.b16 %v358
    %v596 = vunpack.c.l.b16 %v359
    %v597 = vunpack.c.l.b16 %v360
    %v598 = vunpack.c.l.b16 %v361
    %v599 = vunpack.c.l.b16 %v362
    %v600 = vunpack.c.l.b16 %v363
    %v601 = vunpack.c.l.b16 %v364
    %v602 = vunpack.c.l.b16 %v365
    %v603 = vunpack.c.l.b16 %v366
    %v604 = vunpack.c.l.b16 %v367
    %v605 = vunpack.c.l.b16 %v368
    %v606 = vunpack.c.l.b16 %v369
    %v607 = vunpack.c.l.b16 %v370
    %v608 = vunpack.c.l.b16 %v371
    %v609 = vunpack.c.l.b16 %v372
    %v610 = vunpack.c.l.b16 %v373
    %v611 = vunpack.c.l.b16 %v374
    %v612 = vunpack.c.l.b16 %v375
    %v613 = vunpack.c.l.b16 %v376
    %v614 = vunpack.c.l.b16 %v377
    %v615 = vunpack.c.l.b16 %v378
    %v616 = vunpack.c.l.b16 %v379
    %v617 = vunpack.c.l.b16 %v380
    %v618 = vpack.c.b16 %v539, %v538
    %v619 = vpack.c.b16 %v541, %v540
    %v620 = vpack.c.b16 %v543, %v542
    %v621 = vpack.c.b16 %v545, %v544
    %v622 = vpack.c.b16 %v547, %v546
    %v623 = vpack.c.b16 %v549, %v548
    %v624 = vpack.c.b16 %v551, %v550
    %v625 = vpack.c.b16 %v553, %v552
    %v626 = vpack.c.b16 %v555, %v554
    %v627 = vpack.c.b16 %v557, %v556
    %v628 = vpack.c.b16 %v559, %v558
    %v629 = vpack.c.b16 %v561, %v560
    %v630 = vpack.c.b16 %v563, %v562
    %v631 = vpack.c.b16 %v565, %v564
    %v632 = vpack.c.b16 %v567, %v566
    %v633 = vpack.c.b16 %v569, %v568
    %v634 = vpack.c.b16 %v571, %v570
    %v635 = vpack.c.b16 %v573, %v572
    %v636 = vpack.c.b16 %v575, %v574
    %v637 = vpack.c.b16 %v577, %v576
    %v638 = vpack.c.b16 %v579, %v578
    %v639 = vpack.c.b16 %v581, %v580
    %v640 = vpack.c.b16 %v583, %v582
    %v641 = vpack.c.b16 %v585, %v584
    %v642 = vpack.c.b16 %v587, %v586
    %v643 = vpack.c.b16 %v589, %v588
    %v644 = vpack.c.b16 %v591, %v590
    %v645 = vpack.c.b16 %v593, %v592
    %v646 = vpack.c.b16 %v595, %v594
    %v647 = vpack.c.b16 %v597, %v596
    %v648 = vpack.c.b16 %v599, %v598
    %v649 = vpack.c.b16 %v601, %v600
    %v650 = vpack.c.b16 %v603, %v602
    %v651 = vpack.c.b16 %v605, %v604
    %v652 = vpack.c.b16 %v607, %v606
    %v653 = vpack.c.b16 %v609, %v608
    %v654 = vpack.c.b16 %v611, %v610
    %v655 = vpack.c.b16 %v613, %v612
    %v656 = vpack.c.b16 %v615, %v614
    %v657 = vpack.c.b16 %v617, %v616
    %698 = vmatprep.subr.bf16.mxu0 0
    %699 = vmatpush1.bf16.msra.mxu0 %v625
    %700 = vmatprep.subr.bf16.mxu0 0
    %701 = vmatpush1.bf16.msra.mxu0 %v624
    %702 = vmatprep.subr.bf16.mxu0 0
    %703 = vmatpush1.bf16.msra.mxu0 %v623
    %704 = vmatprep.subr.bf16.mxu0 0
    %705 = vmatpush1.bf16.msra.mxu0 %v622
    %706 = vmatprep.subr.bf16.mxu0 0
    %707 = vmatpush1.bf16.msra.mxu0 %v621
    %708 = vmatprep.subr.bf16.mxu0 0
    %709 = vmatpush1.bf16.msra.mxu0 %v620
    %710 = vmatprep.subr.bf16.mxu0 0
    %711 = vmatpush1.bf16.msra.mxu0 %v619
    %712 = vmatprep.subr.bf16.mxu0 0
    %713 = vmatpush1.bf16.msra.mxu0 %v618
    %714 = vmatprep.subr.bf16.mxu0 0
    %715 = vmatpush2.bf16.msra.mxu0 %v633
    %716 = vmatprep.subr.bf16.mxu0 0
    %717 = vmatpush2.bf16.msra.mxu0 %v632
    %718 = vmatprep.subr.bf16.mxu0 0
    %719 = vmatpush2.bf16.msra.mxu0 %v631
    %720 = vmatprep.subr.bf16.mxu0 0
    %721 = vmatpush2.bf16.msra.mxu0 %v630
    %722 = vmatprep.subr.bf16.mxu0 0
    %723 = vmatpush2.bf16.msra.mxu0 %v629
    %724 = vmatprep.subr.bf16.mxu0 0
    %725 = vmatpush2.bf16.msra.mxu0 %v628
    %726 = vmatprep.subr.bf16.mxu0 0
    %727 = vmatpush2.bf16.msra.mxu0 %v627
    %728 = vmatprep.subr.bf16.mxu0 0
    %729 = vmatpush2.bf16.msra.mxu0 %v626
    %730 = vmatprep.mubr.bf16.mxu0 %v429
    %731 = vmatmul.mubr.bf16.gmra.mxu0 %v428
    %v732 = vpop.f32.mrf.mxu0
    %v733 = vadd.f32 %v386, %v732
    %v734 = vpop.f32.mrf.mxu0
    %v735 = vpop.f32.mrf.mxu0
    %v736 = vadd.f32 %v386, %v735
    %v737 = vpop.f32.mrf.mxu0
    %738 = vmatprep.mubr.bf16.mxu0 %v434
    %739 = vmatmul.mubr.bf16.gmra.mxu0 %v433
    %v740 = vpop.f32.mrf.mxu0
    %v741 = vadd.f32 %v386, %v740
    %v742 = vpop.f32.mrf.mxu0
    %v743 = vpop.f32.mrf.mxu0
    %v744 = vadd.f32 %v386, %v743
    %v745 = vpop.f32.mrf.mxu0
    %746 = vmatprep.mubr.bf16.mxu0 %v439
    %747 = vmatmul.mubr.bf16.gmra.mxu0 %v438
    %v748 = vpop.f32.mrf.mxu0
    %v749 = vadd.f32 %v386, %v748
    %v750 = vpop.f32.mrf.mxu0
    %v751 = vpop.f32.mrf.mxu0
    %v752 = vpop.f32.mrf.mxu0
    %753 = vdwg.mxu0
    %754 = vmatprep.subr.bf16.mxu0 0
    %755 = vmatpush1.bf16.msra.mxu0 %v641
    %756 = vmatprep.subr.bf16.mxu0 0
    %757 = vmatpush1.bf16.msra.mxu0 %v640
    %758 = vmatprep.subr.bf16.mxu0 0
    %759 = vmatpush1.bf16.msra.mxu0 %v639
    %760 = vmatprep.subr.bf16.mxu0 0
    %761 = vmatpush1.bf16.msra.mxu0 %v638
    %762 = vmatprep.subr.bf16.mxu0 0
    %763 = vmatpush1.bf16.msra.mxu0 %v637
    %764 = vmatprep.subr.bf16.mxu0 0
    %765 = vmatpush1.bf16.msra.mxu0 %v636
    %766 = vmatprep.subr.bf16.mxu0 0
    %767 = vmatpush1.bf16.msra.mxu0 %v635
    %768 = vmatprep.subr.bf16.mxu0 0
    %769 = vmatpush1.bf16.msra.mxu0 %v634
    %770 = vmatprep.subr.bf16.mxu0 0
    %771 = vmatpush2.bf16.msra.mxu0 %v649
    %772 = vmatprep.subr.bf16.mxu0 0
    %773 = vmatpush2.bf16.msra.mxu0 %v648
    %774 = vmatprep.subr.bf16.mxu0 0
    %775 = vmatpush2.bf16.msra.mxu0 %v647
    %776 = vmatprep.subr.bf16.mxu0 0
    %777 = vmatpush2.bf16.msra.mxu0 %v646
    %778 = vmatprep.subr.bf16.mxu0 0
    %779 = vmatpush2.bf16.msra.mxu0 %v645
    %780 = vmatprep.subr.bf16.mxu0 0
    %781 = vmatpush2.bf16.msra.mxu0 %v644
    %782 = vmatprep.subr.bf16.mxu0 0
    %783 = vmatpush2.bf16.msra.mxu0 %v643
    %784 = vmatprep.subr.bf16.mxu0 0
    %785 = vmatpush2.bf16.msra.mxu0 %v642
    %786 = vmatprep.mubr.bf16.mxu0 %v431
    %787 = vmatmul.mubr.bf16.gmra.mxu0 %v430
    %v788 = vpop.f32.mrf.mxu0
    %v789 = vadd.f32 %v733, %v788
    %v790 = vpop.f32.mrf.mxu0
    %v791 = vpop.f32.mrf.mxu0
    %v792 = vadd.f32 %v736, %v791
    %v793 = vpop.f32.mrf.mxu0
    %794 = vmatprep.mubr.bf16.mxu0 %v436
    %795 = vmatmul.mubr.bf16.gmra.mxu0 %v435
    %v796 = vpop.f32.mrf.mxu0
    %v797 = vadd.f32 %v741, %v796
    %v798 = vpop.f32.mrf.mxu0
    %v799 = vpop.f32.mrf.mxu0
    %v800 = vadd.f32 %v744, %v799
    %v801 = vpop.f32.mrf.mxu0
    %802 = vmatprep.mubr.bf16.mxu0 %v441
    %803 = vmatmul.mubr.bf16.gmra.mxu0 %v440
    %v804 = vpop.f32.mrf.mxu0
    %v805 = vadd.f32 %v749, %v804
    %v806 = vpop.f32.mrf.mxu0
    %v807 = vpop.f32.mrf.mxu0
    %v808 = vpop.f32.mrf.mxu0
    %809 = vdwg.mxu0
    %810 = vmatprep.subr.bf16.mxu0 0
    %811 = vmatpush1.bf16.msra.mxu0 %v657
    %812 = vmatprep.subr.bf16.mxu0 0
    %813 = vmatpush1.bf16.msra.mxu0 %v656
    %814 = vmatprep.subr.bf16.mxu0 0
    %815 = vmatpush1.bf16.msra.mxu0 %v655
    %816 = vmatprep.subr.bf16.mxu0 0
    %817 = vmatpush1.bf16.msra.mxu0 %v654
    %818 = vmatprep.subr.bf16.mxu0 0
    %819 = vmatpush1.bf16.msra.mxu0 %v653
    %820 = vmatprep.subr.bf16.mxu0 0
    %821 = vmatpush1.bf16.msra.mxu0 %v652
    %822 = vmatprep.subr.bf16.mxu0 0
    %823 = vmatpush1.bf16.msra.mxu0 %v651
    %824 = vmatprep.subr.bf16.mxu0 0
    %825 = vmatpush1.bf16.msra.mxu0 %v650
    %826 = vmatprep.subr.bf16.mxu0 0
    %827 = vmatpush2.bf16.msra.mxu0 0
    %828 = vmatprep.subr.bf16.mxu0 0
    %829 = vmatpush2.bf16.msra.mxu0 0
    %830 = vmatprep.subr.bf16.mxu0 0
    %831 = vmatpush2.bf16.msra.mxu0 0
    %832 = vmatprep.subr.bf16.mxu0 0
    %833 = vmatpush2.bf16.msra.mxu0 0
    %834 = vmatprep.subr.bf16.mxu0 0
    %835 = vmatpush2.bf16.msra.mxu0 0
    %836 = vmatprep.subr.bf16.mxu0 0
    %837 = vmatpush2.bf16.msra.mxu0 0
    %838 = vmatprep.subr.bf16.mxu0 0
    %839 = vmatpush2.bf16.msra.mxu0 0
    %840 = vmatprep.subr.bf16.mxu0 0
    %841 = vmatpush2.bf16.msra.mxu0 0
    %842 = vmatprep.mubr.bf16.mxu0 0
    %843 = vmatmul.mubr.bf16.gmra.mxu0 %v432
    %v844 = vpop.f32.mrf.mxu0
    %v845 = vadd.f32 %v789, %v844
    %v846 = vpop.f32.mrf.mxu0
    %v847 = vpop.f32.mrf.mxu0
    %v848 = vadd.f32 %v792, %v847
    %v849 = vpop.f32.mrf.mxu0
    %850 = vmatprep.mubr.bf16.mxu0 0
    %851 = vmatmul.mubr.bf16.gmra.mxu0 %v437
    %v852 = vpop.f32.mrf.mxu0
    %v853 = vadd.f32 %v797, %v852
    %v854 = vpop.f32.mrf.mxu0
    %v855 = vpop.f32.mrf.mxu0
    %v856 = vadd.f32 %v800, %v855
    %v857 = vpop.f32.mrf.mxu0
    %858 = vmatprep.mubr.bf16.mxu0 0
    %859 = vmatmul.mubr.bf16.gmra.mxu0 %v442
    %v860 = vpop.f32.mrf.mxu0
    %v861 = vadd.f32 %v805, %v860
    %v862 = vpop.f32.mrf.mxu0
    %v863 = vpop.f32.mrf.mxu0
    %v864 = vpop.f32.mrf.mxu0
    %865 = vdwg.mxu0
    %866 = vst [vmem:[#allocation8] sm:$0xff] %v845
    %867 = vst [vmem:[#allocation8 + $0x8] sm:$0xff] %v848
    %868 = vst [vmem:[#allocation8 + $0x10] sm:$0xff] %v853
    %869 = vst [vmem:[#allocation8 + $0x18] sm:$0xff] %v856
    %870 = vst [vmem:[#allocation8 + $0x20] sm:$0xff] %v861
    // Predicated region
    $region22: #{tpu_custom_call.1} parent=1 // pred_check
      _
    $region23: #{tpu_custom_call.1} parent=1 // pred_check_branch
      %872 = sbr.rel (0) target = $region25
    $region24: #{tpu_custom_call.1} parent=1 // pred_region
      %s874 = ssub.s32 640, 640
      %875 = vsyncadd [#allocation5], %s874
      %s876 = sshll.u32 [#allocation8], 4
      %s877 = int_to_ptr.vmem [resolvable:$true] %s876
      %882 = dma.vmem_to_hbm [thread:$0]  %s877, 640, %s3, [#allocation5], 128, 128, 8
    $region25: #{tpu_custom_call.1} parent=1 // pred_fallthru
      _
    // Predicated region
    $region26: #{tpu_custom_call.1} parent=1 // pred_check
      _
    $region27: #{tpu_custom_call.1} parent=1 // pred_check_branch
      %884 = sbr.rel (0) target = $region29
    $region28: #{tpu_custom_call.1} parent=1 // pred_region
      %885 = dma.done [#allocation5], 640
    $region29: #{tpu_custom_call.1} parent=1 // pred_fallthru
      _
    %886 = vsyncpa [#allocation4], 1
    %887 = vsyncpa [#allocation7], 1
    %888 = vsyncpa [#allocation5], 1

</llo_original>
